<compile_context>
chip_gen: v5e
topology: v5e:2x2
jax: 0.10.0
libtpu: 0.0.40
codegen_flags: <defaults>
</compile_context>

<pallas_src>
import functools

import jax
import jax.numpy as jnp
from jax.experimental import pallas as pl
from jax.experimental.pallas import tpu as pltpu

ALPHA = 1.0   # module default
GAMMA = 2     # module default (integer exponent -> plain multiplies, no pow/log)


def focal_loss_kernel(logits_ref, targets_ref, loss_ref):
    """Per-row focal loss for one (TILE_N, C) tile of logits."""
    x = logits_ref[...].astype(jnp.float32)       # upcast in vregs (free)
    tgt = targets_ref[...]                        # (TILE_N, 1) int32
    tn, c = x.shape

    # Numerically-stable softmax cross-entropy over the class (lane) axis.
    m = jnp.max(x, axis=-1, keepdims=True)                          # (TILE_N, 1)
    shifted = x - m
    sumexp = jnp.sum(jnp.exp(shifted), axis=-1, keepdims=True)      # (TILE_N, 1)

    # Target-class logit via a one-hot built from an iota.
    # NOTE: out-of-range class ids give an all-zero one-hot (finite but wrong
    # loss) instead of an error like F.cross_entropy; callers pass valid ids.
    class_ids = jax.lax.broadcasted_iota(jnp.int32, (tn, c), 1)
    onehot = (class_ids == tgt).astype(jnp.float32)
    tgt_shift = jnp.sum(shifted * onehot, axis=-1, keepdims=True)   # x_t - m

    ce = jnp.log(sumexp) - tgt_shift              # = logsumexp(x) - x_t   (>= 0)
    pt = jnp.exp(-ce)                             # EUP exp; no divide needed
    one_minus_pt = 1.0 - pt

    # gamma = 2 -> (1 - pt)^2 ; alpha = 1 -> multiply folded away at trace time.
    loss = one_minus_pt * one_minus_pt * ce
    if ALPHA != 1.0:
        loss = ALPHA * loss
    loss_ref[...] = loss.astype(loss_ref.dtype)


def _choose_tile_n(n, c, dtype):
    """Batch-tile size: sublane-aligned, ~1 MiB of logits per block so the
    double-buffered pipeline fits scoped VMEM on every TPU generation while
    amortizing the ~0.35us per-grid-step overhead."""
    itemsize = jnp.dtype(dtype).itemsize
    gran = max(8, 32 // itemsize)                 # 8 rows f32, 16 bf16, 32 int8/fp8
    target_bytes = 1 << 20                        # ~1 MiB of logits per block
    rows = max(gran, target_bytes // max(1, c * itemsize))
    rows = min(rows, 4096)                        # cap rows (lane padding when C < 128)
    rows = max(gran, (rows // gran) * gran)
    rows = min(rows, pl.cdiv(n, gran) * gran)     # never bigger than (padded) batch
    return rows


@functools.partial(jax.jit, static_argnames=("tile_n",))
def focal_loss(logits, targets, tile_n=None):
    """logits: (N, C) float; targets: (N,) int class ids. Returns scalar mean focal loss."""
    n, c = logits.shape
    if tile_n is None:
        tile_n = _choose_tile_n(n, c, logits.dtype)
    targets_2d = targets.astype(jnp.int32).reshape(n, 1)

    per_row = pl.pallas_call(
        focal_loss_kernel,
        out_shape=jax.ShapeDtypeStruct((n, 1), jnp.float32),
        grid_spec=pltpu.PrefetchScalarGridSpec(
            num_scalar_prefetch=0,
            grid=(pl.cdiv(n, tile_n),),
            in_specs=[
                pl.BlockSpec((tile_n, c), lambda i: (i, 0)),   # logits, original dtype
                pl.BlockSpec((tile_n, 1), lambda i: (i, 0)),   # targets
            ],
            out_specs=pl.BlockSpec((tile_n, 1), lambda i: (i, 0)),
        ),
        compiler_params=pltpu.CompilerParams(
            # Batch tiles are independent -> megacore sharding on v7x.
            dimension_semantics=("parallel",),
        ),
    )(logits, targets_2d)

    # Rows past N (when N % tile_n != 0) are masked on store by Pallas, so
    # per_row holds exactly the N per-sample losses; divide by the TOTAL N here.
    return jnp.sum(per_row[:, 0]) / jnp.float32(n)


def focal_loss_ref(logits, targets):
    # pure-JAX reference matching F.cross_entropy + focal weighting
    logp = jax.nn.log_softmax(logits.astype(jnp.float32), axis=-1)
    ce = -jnp.take_along_axis(logp, targets.astype(jnp.int32)[:, None], axis=-1)[:, 0]
    pt = jnp.exp(-ce)
    return jnp.mean(ALPHA * (1.0 - pt) ** GAMMA * ce)


if __name__ == "__main__":
    key = jax.random.PRNGKey(0)
    k1, k2, k3, k4, k5, k6 = jax.random.split(key, 6)

    # Case 1: small (N, C) logits + class-index targets, as the module expects.
    N, C = 8, 16
    logits = jax.random.normal(k1, (N, C), dtype=jnp.float32)
    targets = jax.random.randint(k2, (N,), 0, C, dtype=jnp.int32)
    out = focal_loss(logits, targets)
    jax.block_until_ready(out)
    ref = focal_loss_ref(logits, targets)
    assert jnp.allclose(out, ref, rtol=1e-5, atol=1e-6), (out, ref)

    # Case 2: multi-block grid with a ragged last tile (N not a multiple of
    # tile_n) to exercise the pipelined/parallel path and masked edge stores.
    N2, C2 = 20, 16
    logits2 = jax.random.normal(k3, (N2, C2), dtype=jnp.float32)
    targets2 = jax.random.randint(k4, (N2,), 0, C2, dtype=jnp.int32)
    out2 = focal_loss(logits2, targets2, tile_n=8)
    jax.block_until_ready(out2)
    ref2 = focal_loss_ref(logits2, targets2)
    assert jnp.allclose(out2, ref2, rtol=1e-5, atol=1e-6), (out2, ref2)

    # Case 3: bf16 logits stream through in bf16 (no wrapper upcast) and are
    # upcast to f32 inside the kernel.
    N3, C3 = 16, 16
    logits3 = jax.random.normal(k5, (N3, C3), dtype=jnp.bfloat16)
    targets3 = jax.random.randint(k6, (N3,), 0, C3, dtype=jnp.int32)
    out3 = focal_loss(logits3, targets3)
    jax.block_until_ready(out3)
    ref3 = focal_loss_ref(logits3, targets3)
    assert jnp.allclose(out3, ref3, rtol=1e-4, atol=1e-5), (out3, ref3)

    print("KERNEL_OK")
</pallas_src>

<mosaic_0001>
module attributes {stable_mosaic.version = 11 : i64} {
  func.func @focal_loss_kernel(%arg0: i32, %arg1: memref<8x16xf32, #tpu.memory_space<vmem>>, %arg2: memref<8x1xi32, #tpu.memory_space<vmem>>, %arg3: memref<8x1xf32, #tpu.memory_space<vmem>>) attributes {dimension_semantics = [#tpu.dimension_semantics<parallel>], iteration_bounds = array<i64: 1>, scalar_prefetch = 0 : i64, scratch_operands = 0 : i64, tpu.core_type = #tpu.core_type<tc>, window_params = [{transform_indices = @transform_0, window_bounds = array<i64: 8, 16>}, {transform_indices = @transform_1, window_bounds = array<i64: 8, 1>}, {transform_indices = @transform_2, window_bounds = array<i64: 8, 1>}]} {
    %c0 = arith.constant 0 : index
    %c0_0 = arith.constant 0 : index
    %0 = vector.load %arg1[%c0, %c0_0] : memref<8x16xf32, #tpu.memory_space<vmem>>, vector<8x16xf32>
    %c0_1 = arith.constant 0 : index
    %c0_2 = arith.constant 0 : index
    %1 = vector.load %arg2[%c0_1, %c0_2] : memref<8x1xi32, #tpu.memory_space<vmem>>, vector<8x1xi32>
    %cst = arith.constant dense<0xFF800000> : vector<8xf32>
    %2 = vector.multi_reduction <maximumf>, %0, %cst [1] : vector<8x16xf32> to vector<8xf32>
    %3 = vector.shape_cast %2 : vector<8xf32> to vector<8x1xf32>
    %4 = vector.broadcast %3 : vector<8x1xf32> to vector<8x16xf32>
    %5 = arith.subf %0, %4 : vector<8x16xf32>
    %6 = math.exp %5 : vector<8x16xf32>
    %cst_3 = arith.constant dense<0.000000e+00> : vector<8xf32>
    %7 = vector.multi_reduction <add>, %6, %cst_3 [1] : vector<8x16xf32> to vector<8xf32>
    %8 = vector.shape_cast %7 : vector<8xf32> to vector<8x1xf32>
    %9 = tpu.iota {dimensions = array<i32: 1>} : vector<8x16xi32>
    %10 = vector.broadcast %1 : vector<8x1xi32> to vector<8x16xi32>
    %11 = arith.cmpi eq, %9, %10 : vector<8x16xi32>
    %12 = arith.extui %11 : vector<8x16xi1> to vector<8x16xi32>
    %13 = arith.sitofp %12 : vector<8x16xi32> to vector<8x16xf32>
    %14 = arith.mulf %5, %13 : vector<8x16xf32>
    %cst_4 = arith.constant dense<0.000000e+00> : vector<8xf32>
    %15 = vector.multi_reduction <add>, %14, %cst_4 [1] : vector<8x16xf32> to vector<8xf32>
    %16 = vector.shape_cast %15 : vector<8xf32> to vector<8x1xf32>
    %17 = math.log %8 : vector<8x1xf32>
    %18 = arith.subf %17, %16 : vector<8x1xf32>
    %cst_5 = arith.constant 0.000000e+00 : f32
    %19 = vector.broadcast %cst_5 : f32 to vector<8x1xf32>
    %20 = arith.subf %19, %18 : vector<8x1xf32>
    %21 = math.exp %20 : vector<8x1xf32>
    %cst_6 = arith.constant 1.000000e+00 : f32
    %22 = vector.broadcast %cst_6 : f32 to vector<8x1xf32>
    %23 = arith.subf %22, %21 : vector<8x1xf32>
    %24 = arith.mulf %23, %23 : vector<8x1xf32>
    %25 = arith.mulf %24, %18 : vector<8x1xf32>
    %c0_7 = arith.constant 0 : index
    %c0_8 = arith.constant 0 : index
    %26 = vector.load %arg3[%c0_7, %c0_8] : memref<8x1xf32, #tpu.memory_space<vmem>>, vector<8x1xf32>
    tpu.vector_store %arg3[%c0_7, %c0_8], %25 {strides = array<i32>} : memref<8x1xf32, #tpu.memory_space<vmem>>, vector<8x1xf32>,
    return
  }
  func.func @transform_0(%arg0: i32) -> (i32, i32) {
    %c0_i32 = arith.constant 0 : i32
    %c0_i32_0 = arith.constant 0 : i32
    return %arg0, %c0_i32 : i32, i32
  }
  func.func @transform_1(%arg0: i32) -> (i32, i32) {
    %c0_i32 = arith.constant 0 : i32
    %c0_i32_0 = arith.constant 0 : i32
    return %arg0, %c0_i32 : i32, i32
  }
  func.func @transform_2(%arg0: i32) -> (i32, i32) {
    %c0_i32 = arith.constant 0 : i32
    %c0_i32_0 = arith.constant 0 : i32
    return %arg0, %c0_i32 : i32, i32
  }
}

</mosaic_0001>

<llo_original>
// kernel: focal_loss.1
$region0: #{focal_loss.1}
  #allocation0 [shape = 'u32[]', space=smem, size = 0x4, offset = 0x4, fixed_abs, tag = 'smem constant byte address 0x4 - core index']
  #allocation1 [shape = 'u32[72,128]{1,0:T(1,128)}', space=vmem, size = 0x9000, scoped, tag = 'internal scratch']
  %s0 = inlined_call_operand.vmem [shape: f32[8,16], index: 0, kind: input, shape index: {}]
  %s1 = inlined_call_operand.vmem [shape: s32[8,1], index: 1, kind: input, shape index: {}]
  %s2 = inlined_call_operand.vmem [shape: f32[8,1], index: 2, kind: output, shape index: {}]
  %s3 = sld [smem:[#allocation0]]
  $region18: #{focal_loss.1} parent=0
    _
  %s5 = ssub.s32 1, %s3
  %s6 = scalar_select 0, %s5, %s3
  // Predicated region
  $region2: #{focal_loss.1} parent=0 // pred_check
    _
  $region3: #{focal_loss.1} parent=0 // pred_check_branch
    %8 = sbr.rel (0) target = $region5
  $region4: #{focal_loss.1} parent=0 // pred_region
    _
  $region5: #{focal_loss.1} parent=0 // pred_fallthru
    _
  // Predicated region
  $region6: #{focal_loss.1} parent=0 // pred_check
    _
  $region7: #{focal_loss.1} parent=0 // pred_check_branch
    %10 = sbr.rel (0) target = $region9
  $region8: #{focal_loss.1} parent=0 // pred_region
    _
  $region9: #{focal_loss.1} parent=0 // pred_fallthru
    _
  %v11 = vld [vmem:[%s0] sm:$0xff]
  %v12 = vld [vmem:[%s1] sm:$0xff]
  %vm13 = vcmask 130048
  %v14 = vsel %vm13, %v11, -inf
  %15 = vmax.xlane.f32.xlu0 %v14
  %v16 = vpop.xlane.xlu0 %15
  %v17 = vsub.f32 %v11, %v16
  %v18 = vmul.f32 %v17, 1.442695
  %v19 = vpow.pop %v18
  %v20 = vsel %vm13, %v19, 0.0
  %21 = vadd.xlane.f32.xlu0 %v20
  %v22 = vpop.xlane.xlu0 %21
  %v23 = vlaneseq
  %v24 = vand.u32 %v23, 127
  %25 = vset.pattern.permute.xlu0 0
  %26 = vperm.xlu0 %25, %v12
  %v27 = vpop.permute.xlu0 %26
  %vm28 = vcmp.eq.s32.totalorder %v24, %v27
  %v29 = vsel %vm28, 1, 0
  %v30 = vcvt.s32.f32 %v29
  %v31 = vmul.f32 %v17, %v30
  %v32 = vsel %vm13, %v31, 0.0
  %33 = vadd.xlane.f32.xlu0 %v32
  %v34 = vpop.xlane.xlu0 %33
  %v35 = vlog2.pop %v22
  %v36 = vmul.f32 %v35, 0.6931472
  %v37 = vsub.f32 %v36, %v34
  %v38 = vsub.f32 0.0, %v37
  %v39 = vmul.f32 %v38, 1.442695
  %v40 = vpow.pop %v39
  %v41 = vsub.f32 1.0, %v40
  %v42 = vmul.f32 %v41, %v41
  %v43 = vmul.f32 %v42, %v37
  %vm44 = vcmask 7168
  %45 = vst.msk [vmem:[%s2] sm:$0xff] %vm44, %v43
  // Predicated region
  $region10: #{focal_loss.1} parent=0 // pred_check
    _
  $region11: #{focal_loss.1} parent=0 // pred_check_branch
    %47 = sbr.rel (0) target = $region13
  $region12: #{focal_loss.1} parent=0 // pred_region
    _
  $region13: #{focal_loss.1} parent=0 // pred_fallthru
    _
  // Predicated region
  $region14: #{focal_loss.1} parent=0 // pred_check
    _
  $region15: #{focal_loss.1} parent=0 // pred_check_branch
    %49 = sbr.rel (0) target = $region17
  $region16: #{focal_loss.1} parent=0 // pred_region
    _
  $region17: #{focal_loss.1} parent=0 // pred_fallthru
    _

</llo_original>
